<compile_context>
chip_gen: v6e
topology: v6e:2x2x1
jax: 0.10.0
libtpu: 0.0.40
codegen_flags: <defaults>
</compile_context>

<pallas_src>
import jax
import jax.numpy as jnp
from jax.experimental import pallas as pl
from jax.experimental.pallas import tpu as pltpu


def final_layer_kernel(x_ref, w_ref, sp_ref, o_ref):
    # x_ref:  (TN, H)      current token tile
    # w_ref:  (H, D_pad)   per-batch, scale-folded projection weight (resident over N)
    # sp_ref: (1, D_pad)   per-batch shift@W + bias (resident over N)
    # o_ref:  (TN, D_pad)

    # --- LayerNorm statistics (single pass, f32, biased variance like torch) ---
    x = x_ref[...].astype(jnp.float32)                         # (TN, H)
    mean = jnp.mean(x, axis=-1, keepdims=True)
    mean_sq = jnp.mean(x * x, axis=-1, keepdims=True)
    var = mean_sq - mean * mean
    xn = (x - mean) * jax.lax.rsqrt(var + 1e-6)                # (TN, H)

    # --- scale-folded projection: feed MXU at weight dtype, accumulate in f32 ---
    y = jnp.dot(xn.astype(w_ref.dtype), w_ref[...],
                preferred_element_type=jnp.float32)            # (TN, D_pad)
    y = y + sp_ref[...].astype(jnp.float32)                    # += shift@W + b
    o_ref[...] = y.astype(o_ref.dtype)


def _round_up(a: int, m: int) -> int:
    return ((a + m - 1) // m) * m


def _is_v7x() -> bool:
    try:
        return "v7" in jax.devices()[0].device_kind.lower()
    except Exception:
        return False


def _pick_token_tile(n: int, dtype, is_v7: bool) -> int:
    """Fixed target tile (device/dtype aware); ragged last block is masked by Pallas."""
    if dtype == jnp.bfloat16:
        target, mult = (512 if is_v7 else 1024), 16
    else:
        target, mult = (256 if is_v7 else 512), 8
    return min(target, _round_up(n, mult))


def final_layer_pallas(x, c, w_ada, b_ada, w_lin, b_lin):
    """x: (B, N, H), c: (B, H), w_ada: (H, 2H), b_ada: (2H,), w_lin: (H, D), b_lin: (D,)"""
    B, N, H = x.shape
    D = w_lin.shape[1]

    # --- adaLN modulation hoisted out of the kernel (tiny M=1 matmul) ---
    c_f32 = c.astype(jnp.float32)
    c_silu = c_f32 * jax.nn.sigmoid(c_f32)
    ada = c_silu @ w_ada.astype(jnp.float32) + b_ada.astype(jnp.float32)  # (B, 2H)
    shift = ada[:, :H]                                                    # chunk(2, dim=1)[0]
    scale = ada[:, H:]                                                    # chunk(2, dim=1)[1]

    # --- fold shift + bias through the linear layer: (B, D) ---
    w_lin_f32 = w_lin.astype(jnp.float32)
    shift_proj = shift @ w_lin_f32 + b_lin.astype(jnp.float32)            # (B, D)

    # --- fold (1 + scale) into the weights: (B, H, D) ---
    w_g = ((1.0 + scale)[:, :, None] * w_lin_f32[None, :, :]).astype(w_lin.dtype)

    # --- lane-dense output: zero-pad D up to a multiple of 128 lanes ---
    D_pad = _round_up(D, 128)
    if D_pad != D:
        w_g = jnp.pad(w_g, ((0, 0), (0, 0), (0, D_pad - D)))
        shift_proj = jnp.pad(shift_proj, ((0, 0), (0, D_pad - D)))
    shift_proj = shift_proj.reshape(B, 1, D_pad)

    # --- token tiling ---
    is_v7 = _is_v7x()
    TN = _pick_token_tile(N, x.dtype, is_v7)
    n_tiles = pl.cdiv(N, TN)
    vmem_limit = (48 if is_v7 else 64) * 1024 * 1024

    out = pl.pallas_call(
        final_layer_kernel,
        out_shape=jax.ShapeDtypeStruct((B, N, D_pad), x.dtype),
        grid=(B, n_tiles),
        in_specs=[
            pl.BlockSpec((pl.Squeezed(), TN, H), lambda b, t: (b, t, 0)),     # x tile
            pl.BlockSpec((pl.Squeezed(), H, D_pad), lambda b, t: (b, 0, 0)),  # W_g : per-batch, resident over N
            pl.BlockSpec((pl.Squeezed(), 1, D_pad), lambda b, t: (b, 0, 0)),  # shift_proj : per-batch, resident
        ],
        out_specs=pl.BlockSpec((pl.Squeezed(), TN, D_pad), lambda b, t: (b, t, 0)),
        compiler_params=pltpu.CompilerParams(
            dimension_semantics=("parallel", "parallel"),
            vmem_limit_bytes=vmem_limit,
        ),
    )(x, w_g, shift_proj)

    if D_pad != D:
        out = out[..., :D]
    return out
    # TODO(synk): with bf16 weights at real Latte sizes, scale-folding adds one extra
    # bf16 rounding of the weights; if that matters, keep W_lin shared and apply
    # (1+scale) in bf16 inside the kernel instead (v6e/v7x VPU has native bf16).


def final_layer_ref(x, c, w_ada, b_ada, w_lin, b_lin):
    """Pure-JAX reference mirroring the PyTorch module."""
    H = x.shape[-1]
    c_silu = c * jax.nn.sigmoid(c)
    ada = c_silu @ w_ada + b_ada                    # (B, 2H)
    shift, scale = ada[:, :H], ada[:, H:]
    mean = jnp.mean(x, axis=-1, keepdims=True)
    var = jnp.mean((x - mean) ** 2, axis=-1, keepdims=True)
    xn = (x - mean) / jnp.sqrt(var + 1e-6)
    xm = xn * (1 + scale[:, None, :]) + shift[:, None, :]
    return xm @ w_lin + b_lin


if __name__ == "__main__":
    # Module config: hidden_size=32, patch_size_t=1, patch_size=2, out_channels=4
    hidden_size = 32
    patch_size_t, patch_size, out_channels = 1, 2, 4
    D = patch_size_t * patch_size * patch_size * out_channels   # 16

    B, N = 2, 8
    key = jax.random.PRNGKey(0)
    k_x, k_c, k_wa, k_ba, k_wl, k_bl = jax.random.split(key, 6)

    x = jax.random.normal(k_x, (B, N, hidden_size), dtype=jnp.float32)
    c = jax.random.normal(k_c, (B, hidden_size), dtype=jnp.float32)

    # Deterministic synthetic parameters (Linear weights stored as (in, out)).
    w_ada = jax.random.normal(k_wa, (hidden_size, 2 * hidden_size), dtype=jnp.float32) * 0.02
    b_ada = jax.random.normal(k_ba, (2 * hidden_size,), dtype=jnp.float32) * 0.02
    w_lin = jax.random.normal(k_wl, (hidden_size, D), dtype=jnp.float32) * 0.02
    b_lin = jax.random.normal(k_bl, (D,), dtype=jnp.float32) * 0.02

    out = final_layer_pallas(x, c, w_ada, b_ada, w_lin, b_lin)
    out = jax.block_until_ready(out)

    ref = final_layer_ref(x, c, w_ada, b_ada, w_lin, b_lin)
    assert out.shape == (B, N, D)
    assert jnp.allclose(out, ref, atol=1e-4, rtol=1e-4), "mismatch vs reference"

    print("KERNEL_OK")
</pallas_src>

<mosaic_0001>
module attributes {stable_mosaic.version = 11 : i64} {
  func.func @final_layer_kernel(%arg0: i32, %arg1: i32, %arg2: memref<1x8x32xf32, #tpu.memory_space<vmem>>, %arg3: memref<1x32x128xf32, #tpu.memory_space<vmem>>, %arg4: memref<1x1x128xf32, #tpu.memory_space<vmem>>, %arg5: memref<1x8x128xf32, #tpu.memory_space<vmem>>) attributes {dimension_semantics = [#tpu.dimension_semantics<parallel>, #tpu.dimension_semantics<parallel>], iteration_bounds = array<i64: 2, 1>, scalar_prefetch = 0 : i64, scratch_operands = 0 : i64, tpu.core_type = #tpu.core_type<tc>, window_params = [{transform_indices = @transform_0, window_bounds = array<i64: 1, 8, 32>}, {transform_indices = @transform_1, window_bounds = array<i64: 1, 32, 128>}, {transform_indices = @transform_2, window_bounds = array<i64: 1, 1, 128>}, {transform_indices = @transform_3, window_bounds = array<i64: 1, 8, 128>}]} {
    %c0 = arith.constant 0 : index
    %c0_0 = arith.constant 0 : index
    %c0_1 = arith.constant 0 : index
    %0 = vector.load %arg2[%c0, %c0_0, %c0_1] : memref<1x8x32xf32, #tpu.memory_space<vmem>>, vector<1x8x32xf32>
    %1 = vector.shape_cast %0 : vector<1x8x32xf32> to vector<8x32xf32>
    %cst = arith.constant dense<0.000000e+00> : vector<8xf32>
    %2 = vector.multi_reduction <add>, %1, %cst [1] : vector<8x32xf32> to vector<8xf32>
    %3 = vector.shape_cast %2 : vector<8xf32> to vector<8x1xf32>
    %cst_2 = arith.constant 3.200000e+01 : f32
    %4 = vector.broadcast %cst_2 : f32 to vector<8x1xf32>
    %5 = arith.divf %3, %4 : vector<8x1xf32>
    %6 = arith.mulf %1, %1 : vector<8x32xf32>
    %cst_3 = arith.constant dense<0.000000e+00> : vector<8xf32>
    %7 = vector.multi_reduction <add>, %6, %cst_3 [1] : vector<8x32xf32> to vector<8xf32>
    %8 = vector.shape_cast %7 : vector<8xf32> to vector<8x1xf32>
    %cst_4 = arith.constant 3.200000e+01 : f32
    %9 = vector.broadcast %cst_4 : f32 to vector<8x1xf32>
    %10 = arith.divf %8, %9 : vector<8x1xf32>
    %11 = arith.mulf %5, %5 : vector<8x1xf32>
    %12 = arith.subf %10, %11 : vector<8x1xf32>
    %13 = vector.broadcast %5 : vector<8x1xf32> to vector<8x32xf32>
    %14 = arith.subf %1, %13 : vector<8x32xf32>
    %cst_5 = arith.constant 9.99999997E-7 : f32
    %15 = vector.broadcast %cst_5 : f32 to vector<8x1xf32>
    %16 = arith.addf %12, %15 : vector<8x1xf32>
    %17 = math.rsqrt %16 : vector<8x1xf32>
    %18 = vector.broadcast %17 : vector<8x1xf32> to vector<8x32xf32>
    %19 = arith.mulf %14, %18 : vector<8x32xf32>
    %c0_6 = arith.constant 0 : index
    %c0_7 = arith.constant 0 : index
    %c0_8 = arith.constant 0 : index
    %20 = vector.load %arg3[%c0_6, %c0_7, %c0_8] : memref<1x32x128xf32, #tpu.memory_space<vmem>>, vector<1x32x128xf32>
    %21 = vector.shape_cast %20 : vector<1x32x128xf32> to vector<32x128xf32>
    %cst_9 = arith.constant dense<0.000000e+00> : vector<8x128xf32>
    %22 = tpu.matmul %19, %21, %cst_9 {dimension_numbers = #tpu.dot_dimension_numbers<[1], [0], [0], [1], [0, 0, 1, 1], [], []>} : vector<8x32xf32>, vector<32x128xf32>, vector<8x128xf32> -> vector<8x128xf32>
    %c0_10 = arith.constant 0 : index
    %c0_11 = arith.constant 0 : index
    %c0_12 = arith.constant 0 : index
    %23 = vector.load %arg4[%c0_10, %c0_11, %c0_12] : memref<1x1x128xf32, #tpu.memory_space<vmem>>, vector<1x1x128xf32>
    %24 = vector.shape_cast %23 : vector<1x1x128xf32> to vector<1x128xf32>
    %25 = vector.broadcast %24 : vector<1x128xf32> to vector<8x128xf32>
    %26 = arith.addf %22, %25 : vector<8x128xf32>
    %c0_13 = arith.constant 0 : index
    %c0_14 = arith.constant 0 : index
    %c0_15 = arith.constant 0 : index
    %27 = vector.load %arg5[%c0_13, %c0_14, %c0_15] : memref<1x8x128xf32, #tpu.memory_space<vmem>>, vector<1x8x128xf32>
    %28 = vector.shape_cast %27 : vector<1x8x128xf32> to vector<8x128xf32>
    %29 = vector.shape_cast %26 : vector<8x128xf32> to vector<1x8x128xf32>
    tpu.vector_store %arg5[%c0_13, %c0_14, %c0_15], %29 {strides = array<i32>} : memref<1x8x128xf32, #tpu.memory_space<vmem>>, vector<1x8x128xf32>,
    return
  }
  func.func @transform_0(%arg0: i32, %arg1: i32) -> (i32, i32, i32) {
    %c0_i32 = arith.constant 0 : i32
    %c0_i32_0 = arith.constant 0 : i32
    return %arg0, %arg1, %c0_i32 : i32, i32, i32
  }
  func.func @transform_1(%arg0: i32, %arg1: i32) -> (i32, i32, i32) {
    %c0_i32 = arith.constant 0 : i32
    %c0_i32_0 = arith.constant 0 : i32
    %c0_i32_1 = arith.constant 0 : i32
    return %arg0, %c0_i32, %c0_i32_0 : i32, i32, i32
  }
  func.func @transform_2(%arg0: i32, %arg1: i32) -> (i32, i32, i32) {
    %c0_i32 = arith.constant 0 : i32
    %c0_i32_0 = arith.constant 0 : i32
    %c0_i32_1 = arith.constant 0 : i32
    return %arg0, %c0_i32, %c0_i32_0 : i32, i32, i32
  }
  func.func @transform_3(%arg0: i32, %arg1: i32) -> (i32, i32, i32) {
    %c0_i32 = arith.constant 0 : i32
    %c0_i32_0 = arith.constant 0 : i32
    return %arg0, %arg1, %c0_i32 : i32, i32, i32
  }
}

</mosaic_0001>

<llo_original>
// kernel: tpu_custom_call.1
$region0: #{tpu_custom_call.1}
  #allocation0 [shape = 'u32[]', space=smem, size = 0x4, offset = 0x4, fixed_abs, tag = 'smem constant byte address 0x4 - core index']
  #allocation1 [shape = 'u32[144,128]{1,0:T(1,128)}', space=vmem, size = 0x12000, scoped, tag = 'internal scratch']
  %s0 = inlined_call_operand.hbm [shape: f32[2,8,32], index: 0, kind: input, shape index: {}]
  %s1 = inlined_call_operand.hbm [shape: f32[2,32,128], index: 1, kind: input, shape index: {}]
  %s2 = inlined_call_operand.vmem [shape: f32[2,1,128], index: 2, kind: input, shape index: {}]
  %s3 = inlined_call_operand.hbm [shape: f32[2,8,128], index: 3, kind: output, shape index: {}]
  %s4 = sld [smem:[#allocation0]]
  $region53: #{tpu_custom_call.1} parent=0
    _
  %s6 = ssub.s32 1, %s4
  %s7 = scalar_select 0, %s6, %s4
  $region1: #{tpu_custom_call.1} parent=0
    #allocation2 [shape = 'u8[8192]{0}', space=vmem, size = 0x2000, scoped, tag = 'input window, operand 0']
    #allocation3 [shape = 's32[2]{0}', space=sflag, size = 0x8, scoped, tag = 'scoped memory for tpu_custom_call.1']
    #allocation4 [shape = 's32[2]{0}', space=sflag, size = 0x8, scoped, tag = 'scoped memory for tpu_custom_call.1']
    #allocation5 [shape = 'u8[32768]{0}', space=vmem, size = 0x8000, scoped, tag = 'input window, operand 1']
    #allocation6 [shape = 's32[2]{0}', space=sflag, size = 0x8, scoped, tag = 'scoped memory for tpu_custom_call.1']
    #allocation7 [shape = 'u8[8192]{0}', space=vmem, size = 0x2000, scoped, tag = 'output window, operand 0']
    %8 = vsyncpa [#allocation3], 0
    %s9 = scalar_lea.sflag [#allocation3], 1
    %10 = vsyncpa %s9, 0
    %11 = vsyncpa [#allocation6], 0
    %s12 = scalar_lea.sflag [#allocation6], 1
    %13 = vsyncpa %s12, 0
    %14 = vsyncpa [#allocation4], 0
    %s15 = scalar_lea.sflag [#allocation4], 1
    %16 = vsyncpa %s15, 0
    loop: start=0, step=1, limit=4
    $region2: #{tpu_custom_call.1} parent=1 // loop_pre_header
      _
    $region3: #{tpu_custom_call.1} parent=1 // loop_header
      %s18 = sphi 0, %s22
      %p19 = scmp.ge.s32.totalorder %s18, 4
      %s25 = sphi 0, %s37
      %s26 = sphi 0, %s33
      %s27 = sphi 0, %s25
      %s28 = sphi 0, %s26
      %s29 = sphi 0, %s27
      %s30 = sphi 0, %s28
      %s42 = sphi 0, %s44
      %s45 = sphi 0, %s42
      %s46 = sphi 0, %s45
      %s62 = sphi 0, %s46
      %s68 = sphi 0, %s70
      %s71 = sphi 0, %s68
      %s72 = sphi 0, %s71
      %s88 = sphi 0, %s72
      %s94 = sphi 0, %s96
      %s97 = sphi 0, %s94
      %s98 = sphi 0, %s97
      %s114 = sphi 0, %s98
      %s122 = sphi 0, %s124
      %s125 = sphi 0, %s122
      %s126 = sphi 0, %s125
      %s142 = sphi 0, %s126
    $region4: #{tpu_custom_call.1} parent=1 // loop_header_branch
      %21 = sbr.rel (%p19) target = $region8
    $region5: #{tpu_custom_call.1} parent=1 // loop_body
      %s23 = ssub.s32 %s18, 1
      %s24 = ssub.s32 %s18, 2
      %s31 = sadd.s32 1, %s26
      %p32 = scmp.ge.s32.totalorder %s31, 1
      %s33 = scalar_select %p32, 0, %s31
      %s34 = sadd.s32 1, %s25
      %s35 = scalar_select %p32, %s34, %s25
      %p36 = scmp.ge.s32.totalorder %s35, 2
      %s37 = scalar_select %p36, 0, %s35
      %s38 = ssub.s32 %s25, %s37
      %s39 = ssub.s32 %s26, %s33
      %s40 = sor.u32 %s38, %s39
      %p41 = scmp.eq.s32.totalorder %s40, 0
      %s43 = sadd.s32 %s42, 1
      %s44 = scalar_select %p41, %s42, %s43
      %p47 = pneg %p41
      %p48 = scmp.eq.s32.totalorder %s18, 1
      %p49 = por %p47, %p48
      %p50 = scmp.ne.s32.totalorder %s42, %s45
      %p51 = scmp.eq.s32.totalorder %s18, 0
      %p52 = por %p50, %p51
      %p53 = scmp.ne.s32.totalorder %s42, %s45
      %p54 = scmp.eq.s32.totalorder %s23, 1
      %p55 = por %p53, %p54
      %p56 = scmp.ne.s32.totalorder %s45, %s46
      %p57 = scmp.eq.s32.totalorder %s23, 0
      %p58 = por %p56, %p57
      %p59 = scmp.ne.s32.totalorder %s45, %s46
      %p60 = scmp.eq.s32.totalorder %s24, 1
      %p61 = por %p59, %p60
      %p63 = scmp.ne.s32.totalorder %s46, %s62
      %p64 = scmp.eq.s32.totalorder %s24, 0
      %p65 = por %p63, %p64
      %s66 = ssub.s32 %s25, %s37
      %p67 = scmp.eq.s32.totalorder %s66, 0
      %s69 = sadd.s32 %s68, 1
      %s70 = scalar_select %p67, %s68, %s69
      %p73 = pneg %p67
      %p74 = scmp.eq.s32.totalorder %s18, 1
      %p75 = por %p73, %p74
      %p76 = scmp.ne.s32.totalorder %s68, %s71
      %p77 = scmp.eq.s32.totalorder %s18, 0
      %p78 = por %p76, %p77
      %p79 = scmp.ne.s32.totalorder %s68, %s71
      %p80 = scmp.eq.s32.totalorder %s23, 1
      %p81 = por %p79, %p80
      %p82 = scmp.ne.s32.totalorder %s71, %s72
      %p83 = scmp.eq.s32.totalorder %s23, 0
      %p84 = por %p82, %p83
      %p85 = scmp.ne.s32.totalorder %s71, %s72
      %p86 = scmp.eq.s32.totalorder %s24, 1
      %p87 = por %p85, %p86
      %p89 = scmp.ne.s32.totalorder %s72, %s88
      %p90 = scmp.eq.s32.totalorder %s24, 0
      %p91 = por %p89, %p90
      %s92 = ssub.s32 %s25, %s37
      %p93 = scmp.eq.s32.totalorder %s92, 0
      %s95 = sadd.s32 %s94, 1
      %s96 = scalar_select %p93, %s94, %s95
      %p99 = pneg %p93
      %p100 = scmp.eq.s32.totalorder %s18, 1
      %p101 = por %p99, %p100
      %p102 = scmp.ne.s32.totalorder %s94, %s97
      %p103 = scmp.eq.s32.totalorder %s18, 0
      %p104 = por %p102, %p103
      %p105 = scmp.ne.s32.totalorder %s94, %s97
      %p106 = scmp.eq.s32.totalorder %s23, 1
      %p107 = por %p105, %p106
      %p108 = scmp.ne.s32.totalorder %s97, %s98
      %p109 = scmp.eq.s32.totalorder %s23, 0
      %p110 = por %p108, %p109
      %p111 = scmp.ne.s32.totalorder %s97, %s98
      %p112 = scmp.eq.s32.totalorder %s24, 1
      %p113 = por %p111, %p112
      %p115 = scmp.ne.s32.totalorder %s98, %s114
      %p116 = scmp.eq.s32.totalorder %s24, 0
      %p117 = por %p115, %p116
      %s118 = ssub.s32 %s25, %s37
      %s119 = ssub.s32 %s26, %s33
      %s120 = sor.u32 %s118, %s119
      %p121 = scmp.eq.s32.totalorder %s120, 0
      %s123 = sadd.s32 %s122, 1
      %s124 = scalar_select %p121, %s122, %s123
      %p127 = pneg %p121
      %p128 = scmp.eq.s32.totalorder %s18, 1
      %p129 = por %p127, %p128
      %p130 = scmp.ne.s32.totalorder %s122, %s125
      %p131 = scmp.eq.s32.totalorder %s18, 0
      %p132 = por %p130, %p131
      %p133 = scmp.ne.s32.totalorder %s122, %s125
      %p134 = scmp.eq.s32.totalorder %s23, 1
      %p135 = por %p133, %p134
      %p136 = scmp.ne.s32.totalorder %s125, %s126
      %p137 = scmp.eq.s32.totalorder %s23, 0
      %p138 = por %p136, %p137
      %p139 = scmp.ne.s32.totalorder %s125, %s126
      %p140 = scmp.eq.s32.totalorder %s24, 1
      %p141 = por %p139, %p140
      %p143 = scmp.ne.s32.totalorder %s126, %s142
      %p144 = scmp.eq.s32.totalorder %s24, 0
      %p145 = por %p143, %p144
      %p146 = scmp.le.s32.totalorder 1, %s18
      %p147 = scmp.lt.s32.totalorder %s18, 3
      %p148 = pnand %p146, %p147
      %p149 = pneg %p148
      // Predicated region
      $region9: #{tpu_custom_call.1} parent=5 // pred_check
        _
      $region10: #{tpu_custom_call.1} parent=5 // pred_check_branch
        %151 = sbr.rel (%p148) target = $region12
      $region11: #{tpu_custom_call.1} parent=5 // pred_region
        %s152 = ssub.s32 %s18, 1
      $region12: #{tpu_custom_call.1} parent=5 // pred_fallthru
        _
      %p153 = scmp.lt.s32.totalorder %s18, 2
      // Predicated region
      $region13: #{tpu_custom_call.1} parent=5 // pred_check
        %p154 = pneg %p153
      $region14: #{tpu_custom_call.1} parent=5 // pred_check_branch
        %156 = sbr.rel (%p154) target = $region16
      $region15: #{tpu_custom_call.1} parent=5 // pred_region
        // Predicated region
        $region17: #{tpu_custom_call.1} parent=15 // pred_check
          %p157 = pneg %p52
        $region18: #{tpu_custom_call.1} parent=15 // pred_check_branch
          %159 = sbr.rel (%p157) target = $region20
        $region19: #{tpu_custom_call.1} parent=15 // pred_region
          %s160 = sand.u32 %s42, 1
          %s161 = scalar_lea.sflag [#allocation3], %s160
          %s162 = sand.u32 %s42, 1
          %s163 = smul.addr %s162, 8
          %s164 = scalar_lea.vmem [#allocation2], %s163
          %s166 = ssub.s32 128, 128
          %167 = vsyncadd %s161, %s166
          %s168 = sadd.s32 %s26, %s25
          %s169 = smul.addr %s168, 128
          %s170 = scalar_lea.hbm %s0, %s169
          %s172 = sshll.u32 %s164, 4
          %s173 = int_to_ptr.vmem [resolvable:$true] %s172
          %175 = dma.hbm_to_vmem [thread:$0]  %s170, 128, %s173, %s161
        $region20: #{tpu_custom_call.1} parent=15 // pred_fallthru
          _
        // Predicated region
        $region21: #{tpu_custom_call.1} parent=15 // pred_check
          %p176 = pneg %p78
        $region22: #{tpu_custom_call.1} parent=15 // pred_check_branch
          %178 = sbr.rel (%p176) target = $region24
        $region23: #{tpu_custom_call.1} parent=15 // pred_region
          %s179 = sand.u32 %s68, 1
          %s180 = scalar_lea.sflag [#allocation6], %s179
          %s181 = sand.u32 %s68, 1
          %s182 = smul.addr %s181, 32
          %s183 = scalar_lea.vmem [#allocation5], %s182
          %s185 = ssub.s32 512, 512
          %186 = vsyncadd %s180, %s185
          %s187 = smul.addr %s25, 4
          %s188 = smul.addr %s187, 128
          %s189 = scalar_lea.hbm %s1, %s188
          %s190 = sshll.u32 %s183, 4
          %s191 = int_to_ptr.vmem [resolvable:$true] %s190
          %196 = dma.hbm_to_vmem [thread:$0]  %s189, 512, %s191, %s180, 128, 128, 8
        $region24: #{tpu_custom_call.1} parent=15 // pred_fallthru
          _
        // Predicated region
        $region25: #{tpu_custom_call.1} parent=15 // pred_check
          %p197 = pneg %p104
        $region26: #{tpu_custom_call.1} parent=15 // pred_check_branch
          %199 = sbr.rel (%p197) target = $region28
        $region27: #{tpu_custom_call.1} parent=15 // pred_region
          %p200 = scmp.lt.s32.totalorder %s25, 1
          %s201 = scalar_select %p200, %s25, 1
          %s202 = scalar_lea.vmem %s2, %s201
        $region28: #{tpu_custom_call.1} parent=15 // pred_fallthru
          _
      $region16: #{tpu_custom_call.1} parent=5 // pred_fallthru
        _
      %p203 = scmp.le.s32.totalorder 1, %s18
      %p204 = scmp.lt.s32.totalorder %s18, 3
      %p205 = pnand %p203, %p204
      %p206 = pneg %p205
      // Predicated region
      $region29: #{tpu_custom_call.1} parent=5 // pred_check
        _
      $region30: #{tpu_custom_call.1} parent=5 // pred_check_branch
        %208 = sbr.rel (%p205) target = $region32
      $region31: #{tpu_custom_call.1} parent=5 // pred_region
        %s209 = ssub.s32 %s18, 1
        %s210 = sand.u32 %s45, 1
        %s211 = scalar_lea.sflag [#allocation3], %s210
        %s212 = sand.u32 %s45, 1
        %s213 = smul.addr %s212, 8
        %s214 = scalar_lea.vmem [#allocation2], %s213
        // Predicated region
        $region33: #{tpu_custom_call.1} parent=31 // pred_check
          %p215 = pneg %p58
        $region34: #{tpu_custom_call.1} parent=31 // pred_check_branch
          %217 = sbr.rel (%p215) target = $region36
        $region35: #{tpu_custom_call.1} parent=31 // pred_region
          %218 = dma.done %s211, 128
        $region36: #{tpu_custom_call.1} parent=31 // pred_fallthru
          _
        %s219 = sand.u32 %s71, 1
        %s220 = scalar_lea.sflag [#allocation6], %s219
        %s221 = sand.u32 %s71, 1
        %s222 = smul.addr %s221, 32
        %s223 = scalar_lea.vmem [#allocation5], %s222
        // Predicated region
        $region37: #{tpu_custom_call.1} parent=31 // pred_check
          %p224 = pneg %p84
        $region38: #{tpu_custom_call.1} parent=31 // pred_check_branch
          %226 = sbr.rel (%p224) target = $region40
        $region39: #{tpu_custom_call.1} parent=31 // pred_region
          %227 = dma.done %s220, 512
        $region40: #{tpu_custom_call.1} parent=31 // pred_fallthru
          _
        %s228 = sand.u32 %s45, 1
        %s229 = scalar_lea.sflag [#allocation3], %s228
        %s230 = sand.u32 %s45, 1
        %s231 = smul.addr %s230, 8
        %s232 = scalar_lea.vmem [#allocation2], %s231
        %p233 = pneg %p58
        %p234 = pneg %p55
        %s235 = sand.u32 %s71, 1
        %s236 = scalar_lea.sflag [#allocation6], %s235
        %s237 = sand.u32 %s71, 1
        %s238 = smul.addr %s237, 32
        %s239 = scalar_lea.vmem [#allocation5], %s238
        %p240 = pneg %p84
        %p241 = pneg %p81
        %p242 = scmp.lt.s32.totalorder %s27, 1
        %s243 = scalar_select %p242, %s27, 1
        %s244 = scalar_lea.vmem %s2, %s243
        %p245 = pneg %p110
        %p246 = pneg %p107
        %p247 = pneg %p138
        %p248 = pneg %p135
        %s249 = sand.u32 %s125, 1
        %s250 = scalar_lea.sflag [#allocation4], %s249
        %s251 = sand.u32 %s125, 1
        %s252 = smul.addr %s251, 8
        %s253 = scalar_lea.vmem [#allocation7], %s252
        %p254 = scmp.lt.s32.totalorder %s27, 1
        %s255 = scalar_select %p254, %s27, 1
        %s256 = scalar_lea.vmem %s2, %s255
        %v257 = vld [vmem:[%s214] sm:$0xff]
        %vm258 = vcmask 261120
        %v259 = vsel %vm258, %v257, 0.0
        %260 = vadd.xlane.f32.xlu0 %v259
        %v261 = vpop.xlane.xlu0 %260
        %v262 = vrcp.pop 32.0
        %v263 = vmul.f32 %v261, %v262
        %v264 = vmul.f32 %v257, %v257
        %v265 = vsel %vm258, %v264, 0.0
        %266 = vadd.xlane.f32.xlu0 %v265
        %v267 = vpop.xlane.xlu0 %266
        %v268 = vmul.f32 %v267, %v262
        %v269 = vmul.f32 %v263, %v263
        %v270 = vsub.f32 %v268, %v269
        %v271 = vsub.f32 %v257, %v263
        %v272 = vadd.f32 %v270, 1e-06
        %v273 = vrsqrt.pop %v272
        %v274 = vmul.f32 %v271, %v273
        %v275 = vld [vmem:[%s223] sm:$0xff]
        %v276 = vld [vmem:[%s223 + $0x8] sm:$0xff]
        %v277 = vld [vmem:[%s223 + $0x10] sm:$0xff]
        %v278 = vld [vmem:[%s223 + $0x18] sm:$0xff]
        %v279 = vld [vmem:[%s256] sm:$0x1]
        %v281 = vlaneseq
        %v282 = vshrl.u32 %v281, 7
        %v283 = vsub.s32 0, %v282
        %v284 = vrot.slane %v279, %v283
        %v287 = vsel %vm258, %v274, 0
        %289 = vmatprep.subr.mxu0 0.0
        %290 = vmatpush1.msra.mxu0 0.0
        %291 = vmatprep.subr.mxu0 0.0
        %292 = vmatpush1.msra.mxu0 0.0
        %293 = vmatprep.subr.mxu0 0.0
        %294 = vmatpush1.msra.mxu0 0.0
        %295 = vmatprep.subr.mxu0 0.0
        %296 = vmatpush1.msra.mxu0 0.0
        %297 = vmatprep.subr.mxu0 0.0
        %298 = vmatpush1.msra.mxu0 0.0
        %299 = vmatprep.subr.mxu0 0.0
        %300 = vmatpush1.msra.mxu0 0.0
        %301 = vmatprep.subr.mxu0 0.0
        %302 = vmatpush1.msra.mxu0 0.0
        %303 = vmatprep.subr.mxu0 0.0
        %304 = vmatpush1.msra.mxu0 0.0
        %305 = vmatprep.subr.mxu0 0.0
        %306 = vmatpush1.msra.mxu0 0.0
        %307 = vmatprep.subr.mxu0 0.0
        %308 = vmatpush1.msra.mxu0 0.0
        %309 = vmatprep.subr.mxu0 0.0
        %310 = vmatpush1.msra.mxu0 0.0
        %311 = vmatprep.subr.mxu0 0.0
        %312 = vmatpush1.msra.mxu0 0.0
        %313 = vmatprep.subr.mxu0 0.0
        %314 = vmatpush1.msra.mxu0 %v278
        %315 = vmatprep.subr.mxu0 0.0
        %316 = vmatpush1.msra.mxu0 %v277
        %317 = vmatprep.subr.mxu0 0.0
        %318 = vmatpush1.msra.mxu0 %v276
        %319 = vmatprep.subr.mxu0 0.0
        %320 = vmatpush1.msra.mxu0 %v275
        %321 = vmatprep.subr.mxu0 0.0
        %322 = vmatpush2.msra.mxu0 0.0
        %323 = vmatprep.subr.mxu0 0.0
        %324 = vmatpush2.msra.mxu0 0.0
        %325 = vmatprep.subr.mxu0 0.0
        %326 = vmatpush2.msra.mxu0 0.0
        %327 = vmatprep.subr.mxu0 0.0
        %328 = vmatpush2.msra.mxu0 0.0
        %329 = vmatprep.subr.mxu0 0.0
        %330 = vmatpush2.msra.mxu0 0.0
        %331 = vmatprep.subr.mxu0 0.0
        %332 = vmatpush2.msra.mxu0 0.0
        %333 = vmatprep.subr.mxu0 0.0
        %334 = vmatpush2.msra.mxu0 0.0
        %335 = vmatprep.subr.mxu0 0.0
        %336 = vmatpush2.msra.mxu0 0.0
        %337 = vmatprep.subr.mxu0 0.0
        %338 = vmatpush2.msra.mxu0 0.0
        %339 = vmatprep.subr.mxu0 0.0
        %340 = vmatpush2.msra.mxu0 0.0
        %341 = vmatprep.subr.mxu0 0.0
        %342 = vmatpush2.msra.mxu0 0.0
        %343 = vmatprep.subr.mxu0 0.0
        %344 = vmatpush2.msra.mxu0 0.0
        %345 = vmatprep.subr.mxu0 0.0
        %346 = vmatpush2.msra.mxu0 0.0
        %347 = vmatprep.subr.mxu0 0.0
        %348 = vmatpush2.msra.mxu0 0.0
        %349 = vmatprep.subr.mxu0 0.0
        %350 = vmatpush2.msra.mxu0 0.0
        %351 = vmatprep.subr.mxu0 0.0
        %352 = vmatpush2.msra.mxu0 0.0
        %353 = vmatprep.mubr.f32.mxu0 0.0
        %354 = vmatmul.mubr.f32.gmra.mxu0 %v287
        %v355 = vpop.f32.mrf.mxu0
        %v356 = vadd.f32 %v284, %v355
        %v357 = vpop.f32.mrf.mxu0
        %358 = vdwg.mxu0
        %359 = vst [vmem:[%s253] sm:$0xff] %v356
        %s360 = sand.u32 %s125, 1
        %s361 = scalar_lea.sflag [#allocation4], %s360
        %s362 = sand.u32 %s125, 1
        %s363 = smul.addr %s362, 8
        %s364 = scalar_lea.vmem [#allocation7], %s363
        // Predicated region
        $region41: #{tpu_custom_call.1} parent=31 // pred_check
          %p365 = pneg %p135
        $region42: #{tpu_custom_call.1} parent=31 // pred_check_branch
          %367 = sbr.rel (%p365) target = $region44
        $region43: #{tpu_custom_call.1} parent=31 // pred_region
          %s369 = ssub.s32 128, 128
          %370 = vsyncadd %s361, %s369
          %s371 = sadd.s32 %s28, %s27
          %s372 = smul.addr %s371, 128
          %s373 = scalar_lea.hbm %s3, %s372
          %s375 = sshll.u32 %s364, 4
          %s376 = int_to_ptr.vmem [resolvable:$true] %s375
          %378 = dma.vmem_to_hbm [thread:$0]  %s376, 128, %s373, %s361
        $region44: #{tpu_custom_call.1} parent=31 // pred_fallthru
          _
      $region32: #{tpu_custom_call.1} parent=5 // pred_fallthru
        _
      %p379 = scmp.le.s32.totalorder 2, %s18
      // Predicated region
      $region45: #{tpu_custom_call.1} parent=5 // pred_check
        %p380 = pneg %p379
      $region46: #{tpu_custom_call.1} parent=5 // pred_check_branch
        %382 = sbr.rel (%p380) target = $region48
      $region47: #{tpu_custom_call.1} parent=5 // pred_region
        %s383 = ssub.s32 %s18, 2
        // Predicated region
        $region49: #{tpu_custom_call.1} parent=47 // pred_check
          %p384 = pneg %p141
        $region50: #{tpu_custom_call.1} parent=47 // pred_check_branch
          %386 = sbr.rel (%p384) target = $region52
        $region51: #{tpu_custom_call.1} parent=47 // pred_region
          %s387 = sand.u32 %s126, 1
          %s388 = scalar_lea.sflag [#allocation4], %s387
          %s389 = sand.u32 %s126, 1
          %s390 = smul.addr %s389, 8
          %s391 = scalar_lea.vmem [#allocation7], %s390
          %392 = dma.done %s388, 128
        $region52: #{tpu_custom_call.1} parent=47 // pred_fallthru
          _
      $region48: #{tpu_custom_call.1} parent=5 // pred_fallthru
        _
    $region6: #{tpu_custom_call.1} parent=1 // loop_footer
      %s22 = sadd.s32 1, %s18
    $region7: #{tpu_custom_call.1} parent=1 // loop_footer_branch
      %17 = sbr.rel target = $region3
    $region8: #{tpu_custom_call.1} parent=1 // loop_exit
      _
    %393 = vsyncpa [#allocation3], 1
    %s394 = scalar_lea.sflag [#allocation3], 1
    %395 = vsyncpa %s394, 1
    %396 = vsyncpa [#allocation6], 1
    %s397 = scalar_lea.sflag [#allocation6], 1
    %398 = vsyncpa %s397, 1
    %399 = vsyncpa [#allocation4], 1
    %s400 = scalar_lea.sflag [#allocation4], 1
    %401 = vsyncpa %s400, 1

</llo_original>
